<compile_context>
chip_gen: v7x
topology: tpu7x:2x2x1
jax: 0.10.0
libtpu: 0.0.40
codegen_flags: <defaults>
</compile_context>

<pallas_src>
import jax
import jax.numpy as jnp
from jax.experimental import pallas as pl
from jax.experimental.pallas import tpu as pltpu


def _round_up(a, b):
    return (a + b - 1) // b * b


def conv_block_forward(x, weight, bias, pool_size=2):
    """Fused Conv2d(valid, stride 1) -> ReLU -> MaxPool2d(2) forward.

    x: (N, Cin, H, W) f32; weight: (Cout, Cin, kh, kw); bias: (Cout,).
    Returns (N, Cout, Hp, Wp) f32, identical to the PyTorch ConvBlock.
    """
    assert pool_size == 2, "kernel is specialized for pool_size=2"
    N, C_in, H, W = x.shape
    C_out, _, kh, kw = weight.shape
    Ho, Wo = H - kh + 1, W - kw + 1            # VALID conv, stride 1
    Hp, Wp = Ho // pool_size, Wo // pool_size  # MaxPool2d floor behaviour
    assert Hp > 0 and Wp > 0

    # ---- static layout parameters ------------------------------------------------
    # Parity split: x[n, c, 2i+a, 2j+b] -> xf[n, (a*2+b)*Cin + c, i*Wh + j].
    Hh = Hp + kh // 2                 # parity rows needed (includes conv/pool halo)
    Wh = Wp + kw // 2                 # parity cols needed
    Pout_valid = Hp * Wh              # valid pooled pixels per sample (lane = hp*Wh+wp)
    Pout = _round_up(Pout_valid, 128)          # lane-dense output (unmasked stores)
    halo = (kh // 2) * Wh + (kw // 2)          # largest in-kernel lane shift
    Ps = _round_up(Pout + halo, 128)           # per-sample source lanes (reads stay in-block)

    K = C_in * kh * kw
    K_pad = _round_up(K, 8)                    # contraction rows (sublane tile)
    C_out_pad = _round_up(C_out, 8)            # sublane-aligned output channels

    f32 = jnp.float32

    # ---- host-side prep: 1x-sized space-to-depth transpose (NOT a 9x im2col) -----
    xpad = jnp.pad(x.astype(f32),
                   ((0, 0), (0, 0),
                    (0, max(0, 2 * Hh - H)), (0, max(0, 2 * Wh - W))))
    xs = xpad[:, :, :2 * Hh, :2 * Wh]
    xe = xs.reshape(N, C_in, Hh, 2, Wh, 2)     # (n, c, i, a, j, b)
    xe = xe.transpose(0, 3, 5, 1, 2, 4)        # (n, a, b, c, i, j)
    xe = xe.reshape(N, 4 * C_in, Hh * Wh)      # lane index = i*Wh + j
    xf = jnp.pad(xe, ((0, 0), (0, 0), (0, Ps - Hh * Wh)))          # (N, 4*Cin, Ps)

    # weight -> (C_out_pad, K_pad); column order (dy, dx, c) matches the patch rows
    w_mat = weight.astype(f32).transpose(0, 2, 3, 1).reshape(C_out, K)
    w_mat = jnp.pad(w_mat, ((0, C_out_pad - C_out), (0, K_pad - K)))
    b_col = jnp.pad(bias.astype(f32), (0, C_out_pad - C_out)).reshape(C_out_pad, 1)

    pool_pos = tuple((py, px) for py in range(2) for px in range(2))

    # ---- the fused kernel ---------------------------------------------------------
    def kernel(xf_ref, w_ref, b_ref, o_ref, p_ref):
        # xf_ref: (4*Cin, Ps)      one sample, parity-split, lane-flat (halo included)
        # w_ref : (C_out_pad, K_pad)
        # b_ref : (C_out_pad, 1)
        # o_ref : (C_out_pad, Pout)         pooled output tile, lane-dense
        # p_ref : (K_pad, 4*Pout) scratch   patch matrix; pool positions on lane chunks
        if K_pad > K:  # zero the few contraction pad rows (their weight cols are 0 too)
            p_ref[pl.ds(K, K_pad - K), :] = jnp.zeros((K_pad - K, 4 * Pout), f32)
        # In-kernel im2col: one (Cin, Pout) lane-shifted block copy per (pool pos, tap).
        for g, (py, px) in enumerate(pool_pos):
            for dy in range(kh):
                for dx in range(kw):
                    s, t = py + dy, px + dx
                    src_ch = ((s % 2) * 2 + (t % 2)) * C_in   # parity plane
                    off = (s // 2) * Wh + (t // 2)            # constant lane shift
                    row = (dy * kw + dx) * C_in
                    p_ref[pl.ds(row, C_in), pl.ds(g * Pout, Pout)] = \
                        xf_ref[pl.ds(src_ch, C_in), pl.ds(off, Pout)]
        # One MXU matmul covers all 4 pool positions (no block-diagonal weight).
        y = jnp.dot(w_ref[...], p_ref[...], preferred_element_type=f32)  # (C_out_pad, 4*Pout)
        r = jnp.maximum(jnp.maximum(y[:, 0 * Pout:1 * Pout], y[:, 1 * Pout:2 * Pout]),
                        jnp.maximum(y[:, 2 * Pout:3 * Pout], y[:, 3 * Pout:4 * Pout]))
        # relu(x + b) is monotone, so max -> bias -> relu == maxpool(relu(conv + b)).
        o_ref[...] = jnp.maximum(r + b_ref[...], 0.0).astype(o_ref.dtype)

    # VMEM budget derived from the actual per-step footprint (v7x has only 64 MiB).
    step_bytes = 4 * (2 * 4 * C_in * Ps + 2 * C_out_pad * Pout
                      + C_out_pad * K_pad + C_out_pad + K_pad * 4 * Pout)
    vmem_limit = min(64 * 1024 * 1024, max(32 * 1024 * 1024, 2 * step_bytes + (8 << 20)))

    cost = pl.CostEstimate(
        flops=2 * N * C_out_pad * K_pad * 4 * Pout,
        transcendentals=0,
        bytes_accessed=4 * (N * 4 * C_in * Ps + N * C_out_pad * Pout
                            + C_out_pad * K_pad + C_out_pad))

    out = pl.pallas_call(
        kernel,
        out_shape=jax.ShapeDtypeStruct((N, C_out_pad, Pout), f32),
        grid=(N,),
        in_specs=[
            pl.BlockSpec((None, 4 * C_in, Ps), lambda n: (n, 0, 0)),   # streamed per sample
            pl.BlockSpec((C_out_pad, K_pad), lambda n: (0, 0)),        # resident weight
            pl.BlockSpec((C_out_pad, 1), lambda n: (0, 0)),            # resident bias
        ],
        out_specs=pl.BlockSpec((None, C_out_pad, Pout), lambda n: (n, 0, 0)),
        scratch_shapes=[pltpu.VMEM((K_pad, 4 * Pout), f32)],
        compiler_params=pltpu.CompilerParams(
            dimension_semantics=("parallel",),   # samples independent -> megacore shard
            vmem_limit_bytes=vmem_limit,
        ),
        cost_estimate=cost,
    )(xf, w_mat, b_col)

    # strip channel / lane padding, back to NCHW
    out = out[:, :C_out, :Pout_valid].reshape(N, C_out, Hp, Wh)[:, :, :, :Wp]
    return out


def reference(x, weight, bias, pool_size=2):
    y = jax.lax.conv_general_dilated(
        x, weight, window_strides=(1, 1), padding="VALID",
        dimension_numbers=("NCHW", "OIHW", "NCHW"))
    y = y + bias.reshape(1, -1, 1, 1)
    y = jnp.maximum(y, 0.0)
    y = jax.lax.reduce_window(
        y, -jnp.inf, jax.lax.max,
        (1, 1, pool_size, pool_size), (1, 1, pool_size, pool_size), "VALID")
    return y


if __name__ == "__main__":
    key = jax.random.PRNGKey(0)
    kx, kw_, kb = jax.random.split(key, 3)

    # small shapes consistent with ConvBlock(num_inp_channels=4, num_out_fmaps=8, kernel_size=3)
    N, C_in, H, W = 2, 4, 16, 16
    C_out, ksize = 8, 3

    x = jax.random.normal(kx, (N, C_in, H, W), jnp.float32)

    # PyTorch-style uniform init: U(-1/sqrt(fan_in), 1/sqrt(fan_in))
    fan_in = C_in * ksize * ksize
    bound = 1.0 / (fan_in ** 0.5)
    weight = jax.random.uniform(kw_, (C_out, C_in, ksize, ksize), jnp.float32, -bound, bound)
    bias = jax.random.uniform(kb, (C_out,), jnp.float32, -bound, bound)

    out = jax.jit(conv_block_forward)(x, weight, bias)
    out = jax.block_until_ready(out)

    ref = reference(x, weight, bias)
    assert out.shape == ref.shape == (N, C_out, 7, 7), (out.shape, ref.shape)
    err = float(jnp.max(jnp.abs(out - ref)))
    assert err < 1e-4, err
    print("KERNEL_OK")
</pallas_src>

<mosaic_0001>
module attributes {stable_mosaic.version = 11 : i64} {
  func.func @kernel(%arg0: i32, %arg1: memref<1x16x256xf32, #tpu.memory_space<vmem>>, %arg2: memref<8x40xf32, #tpu.memory_space<vmem>>, %arg3: memref<8x1xf32, #tpu.memory_space<vmem>>, %arg4: memref<1x8x128xf32, #tpu.memory_space<vmem>>, %arg5: memref<40x512xf32, #tpu.memory_space<vmem>>) attributes {dimension_semantics = [#tpu.dimension_semantics<parallel>], iteration_bounds = array<i64: 2>, scalar_prefetch = 0 : i64, scratch_operands = 1 : i64, tpu.core_type = #tpu.core_type<tc>, window_params = [{transform_indices = @transform_0, window_bounds = array<i64: 1, 16, 256>}, {pipeline_mode = #tpu.pipeline_mode<synchronous>, transform_indices = @transform_1, window_bounds = array<i64: 8, 40>}, {pipeline_mode = #tpu.pipeline_mode<synchronous>, transform_indices = @transform_2, window_bounds = array<i64: 8, 1>}, {transform_indices = @transform_3, window_bounds = array<i64: 1, 8, 128>}]} {
    %cst = arith.constant 0.000000e+00 : f32
    %0 = vector.broadcast %cst : f32 to vector<4x512xf32>
    %c36 = arith.constant 36 : index
    %c0 = arith.constant 0 : index
    %1 = vector.load %arg5[%c36, %c0] : memref<40x512xf32, #tpu.memory_space<vmem>>, vector<4x512xf32>
    tpu.vector_store %arg5[%c36, %c0], %0 {strides = array<i32>} : memref<40x512xf32, #tpu.memory_space<vmem>>, vector<4x512xf32>,
    %c0_0 = arith.constant 0 : index
    %c0_1 = arith.constant 0 : index
    %c0_2 = arith.constant 0 : index
    %2 = vector.load %arg1[%c0_0, %c0_1, %c0_2] : memref<1x16x256xf32, #tpu.memory_space<vmem>>, vector<1x4x128xf32>
    %3 = vector.shape_cast %2 : vector<1x4x128xf32> to vector<4x128xf32>
    %c0_3 = arith.constant 0 : index
    %c0_4 = arith.constant 0 : index
    %4 = vector.load %arg5[%c0_3, %c0_4] : memref<40x512xf32, #tpu.memory_space<vmem>>, vector<4x128xf32>
    tpu.vector_store %arg5[%c0_3, %c0_4], %3 {strides = array<i32>} : memref<40x512xf32, #tpu.memory_space<vmem>>, vector<4x128xf32>,
    %c0_5 = arith.constant 0 : index
    %c4 = arith.constant 4 : index
    %c0_6 = arith.constant 0 : index
    %5 = vector.load %arg1[%c0_5, %c4, %c0_6] : memref<1x16x256xf32, #tpu.memory_space<vmem>>, vector<1x4x128xf32>
    %6 = vector.shape_cast %5 : vector<1x4x128xf32> to vector<4x128xf32>
    %c4_7 = arith.constant 4 : index
    %c0_8 = arith.constant 0 : index
    %7 = vector.load %arg5[%c4_7, %c0_8] : memref<40x512xf32, #tpu.memory_space<vmem>>, vector<4x128xf32>
    tpu.vector_store %arg5[%c4_7, %c0_8], %6 {strides = array<i32>} : memref<40x512xf32, #tpu.memory_space<vmem>>, vector<4x128xf32>,
    %c0_9 = arith.constant 0 : index
    %c0_10 = arith.constant 0 : index
    %c1 = arith.constant 1 : index
    %8 = vector.load %arg1[%c0_9, %c0_10, %c1] : memref<1x16x256xf32, #tpu.memory_space<vmem>>, vector<1x4x128xf32>
    %9 = vector.shape_cast %8 : vector<1x4x128xf32> to vector<4x128xf32>
    %c8 = arith.constant 8 : index
    %c0_11 = arith.constant 0 : index
    %10 = vector.load %arg5[%c8, %c0_11] : memref<40x512xf32, #tpu.memory_space<vmem>>, vector<4x128xf32>
    tpu.vector_store %arg5[%c8, %c0_11], %9 {strides = array<i32>} : memref<40x512xf32, #tpu.memory_space<vmem>>, vector<4x128xf32>,
    %c0_12 = arith.constant 0 : index
    %c8_13 = arith.constant 8 : index
    %c0_14 = arith.constant 0 : index
    %11 = vector.load %arg1[%c0_12, %c8_13, %c0_14] : memref<1x16x256xf32, #tpu.memory_space<vmem>>, vector<1x4x128xf32>
    %12 = vector.shape_cast %11 : vector<1x4x128xf32> to vector<4x128xf32>
    %c12 = arith.constant 12 : index
    %c0_15 = arith.constant 0 : index
    %13 = vector.load %arg5[%c12, %c0_15] : memref<40x512xf32, #tpu.memory_space<vmem>>, vector<4x128xf32>
    tpu.vector_store %arg5[%c12, %c0_15], %12 {strides = array<i32>} : memref<40x512xf32, #tpu.memory_space<vmem>>, vector<4x128xf32>,
    %c0_16 = arith.constant 0 : index
    %c12_17 = arith.constant 12 : index
    %c0_18 = arith.constant 0 : index
    %14 = vector.load %arg1[%c0_16, %c12_17, %c0_18] : memref<1x16x256xf32, #tpu.memory_space<vmem>>, vector<1x4x128xf32>
    %15 = vector.shape_cast %14 : vector<1x4x128xf32> to vector<4x128xf32>
    %c16 = arith.constant 16 : index
    %c0_19 = arith.constant 0 : index
    %16 = vector.load %arg5[%c16, %c0_19] : memref<40x512xf32, #tpu.memory_space<vmem>>, vector<4x128xf32>
    tpu.vector_store %arg5[%c16, %c0_19], %15 {strides = array<i32>} : memref<40x512xf32, #tpu.memory_space<vmem>>, vector<4x128xf32>,
    %c0_20 = arith.constant 0 : index
    %c8_21 = arith.constant 8 : index
    %c1_22 = arith.constant 1 : index
    %17 = vector.load %arg1[%c0_20, %c8_21, %c1_22] : memref<1x16x256xf32, #tpu.memory_space<vmem>>, vector<1x4x128xf32>
    %18 = vector.shape_cast %17 : vector<1x4x128xf32> to vector<4x128xf32>
    %c20 = arith.constant 20 : index
    %c0_23 = arith.constant 0 : index
    %19 = vector.load %arg5[%c20, %c0_23] : memref<40x512xf32, #tpu.memory_space<vmem>>, vector<4x128xf32>
    tpu.vector_store %arg5[%c20, %c0_23], %18 {strides = array<i32>} : memref<40x512xf32, #tpu.memory_space<vmem>>, vector<4x128xf32>,
    %c0_24 = arith.constant 0 : index
    %c0_25 = arith.constant 0 : index
    %c8_26 = arith.constant 8 : index
    %20 = vector.load %arg1[%c0_24, %c0_25, %c8_26] : memref<1x16x256xf32, #tpu.memory_space<vmem>>, vector<1x4x128xf32>
    %21 = vector.shape_cast %20 : vector<1x4x128xf32> to vector<4x128xf32>
    %c24 = arith.constant 24 : index
    %c0_27 = arith.constant 0 : index
    %22 = vector.load %arg5[%c24, %c0_27] : memref<40x512xf32, #tpu.memory_space<vmem>>, vector<4x128xf32>
    tpu.vector_store %arg5[%c24, %c0_27], %21 {strides = array<i32>} : memref<40x512xf32, #tpu.memory_space<vmem>>, vector<4x128xf32>,
    %c0_28 = arith.constant 0 : index
    %c4_29 = arith.constant 4 : index
    %c8_30 = arith.constant 8 : index
    %23 = vector.load %arg1[%c0_28, %c4_29, %c8_30] : memref<1x16x256xf32, #tpu.memory_space<vmem>>, vector<1x4x128xf32>
    %24 = vector.shape_cast %23 : vector<1x4x128xf32> to vector<4x128xf32>
    %c28 = arith.constant 28 : index
    %c0_31 = arith.constant 0 : index
    %25 = vector.load %arg5[%c28, %c0_31] : memref<40x512xf32, #tpu.memory_space<vmem>>, vector<4x128xf32>
    tpu.vector_store %arg5[%c28, %c0_31], %24 {strides = array<i32>} : memref<40x512xf32, #tpu.memory_space<vmem>>, vector<4x128xf32>,
    %c0_32 = arith.constant 0 : index
    %c0_33 = arith.constant 0 : index
    %c9 = arith.constant 9 : index
    %26 = vector.load %arg1[%c0_32, %c0_33, %c9] : memref<1x16x256xf32, #tpu.memory_space<vmem>>, vector<1x4x128xf32>
    %27 = vector.shape_cast %26 : vector<1x4x128xf32> to vector<4x128xf32>
    %c32 = arith.constant 32 : index
    %c0_34 = arith.constant 0 : index
    %28 = vector.load %arg5[%c32, %c0_34] : memref<40x512xf32, #tpu.memory_space<vmem>>, vector<4x128xf32>
    tpu.vector_store %arg5[%c32, %c0_34], %27 {strides = array<i32>} : memref<40x512xf32, #tpu.memory_space<vmem>>, vector<4x128xf32>,
    %c0_35 = arith.constant 0 : index
    %c4_36 = arith.constant 4 : index
    %c0_37 = arith.constant 0 : index
    %29 = vector.load %arg1[%c0_35, %c4_36, %c0_37] : memref<1x16x256xf32, #tpu.memory_space<vmem>>, vector<1x4x128xf32>
    %30 = vector.shape_cast %29 : vector<1x4x128xf32> to vector<4x128xf32>
    %c0_38 = arith.constant 0 : index
    %c128 = arith.constant 128 : index
    %31 = vector.load %arg5[%c0_38, %c128] : memref<40x512xf32, #tpu.memory_space<vmem>>, vector<4x128xf32>
    tpu.vector_store %arg5[%c0_38, %c128], %30 {strides = array<i32>} : memref<40x512xf32, #tpu.memory_space<vmem>>, vector<4x128xf32>,
    %c0_39 = arith.constant 0 : index
    %c0_40 = arith.constant 0 : index
    %c1_41 = arith.constant 1 : index
    %32 = vector.load %arg1[%c0_39, %c0_40, %c1_41] : memref<1x16x256xf32, #tpu.memory_space<vmem>>, vector<1x4x128xf32>
    %33 = vector.shape_cast %32 : vector<1x4x128xf32> to vector<4x128xf32>
    %c4_42 = arith.constant 4 : index
    %c128_43 = arith.constant 128 : index
    %34 = vector.load %arg5[%c4_42, %c128_43] : memref<40x512xf32, #tpu.memory_space<vmem>>, vector<4x128xf32>
    tpu.vector_store %arg5[%c4_42, %c128_43], %33 {strides = array<i32>} : memref<40x512xf32, #tpu.memory_space<vmem>>, vector<4x128xf32>,
    %c0_44 = arith.constant 0 : index
    %c4_45 = arith.constant 4 : index
    %c1_46 = arith.constant 1 : index
    %35 = vector.load %arg1[%c0_44, %c4_45, %c1_46] : memref<1x16x256xf32, #tpu.memory_space<vmem>>, vector<1x4x128xf32>
    %36 = vector.shape_cast %35 : vector<1x4x128xf32> to vector<4x128xf32>
    %c8_47 = arith.constant 8 : index
    %c128_48 = arith.constant 128 : index
    %37 = vector.load %arg5[%c8_47, %c128_48] : memref<40x512xf32, #tpu.memory_space<vmem>>, vector<4x128xf32>
    tpu.vector_store %arg5[%c8_47, %c128_48], %36 {strides = array<i32>} : memref<40x512xf32, #tpu.memory_space<vmem>>, vector<4x128xf32>,
    %c0_49 = arith.constant 0 : index
    %c12_50 = arith.constant 12 : index
    %c0_51 = arith.constant 0 : index
    %38 = vector.load %arg1[%c0_49, %c12_50, %c0_51] : memref<1x16x256xf32, #tpu.memory_space<vmem>>, vector<1x4x128xf32>
    %39 = vector.shape_cast %38 : vector<1x4x128xf32> to vector<4x128xf32>
    %c12_52 = arith.constant 12 : index
    %c128_53 = arith.constant 128 : index
    %40 = vector.load %arg5[%c12_52, %c128_53] : memref<40x512xf32, #tpu.memory_space<vmem>>, vector<4x128xf32>
    tpu.vector_store %arg5[%c12_52, %c128_53], %39 {strides = array<i32>} : memref<40x512xf32, #tpu.memory_space<vmem>>, vector<4x128xf32>,
    %c0_54 = arith.constant 0 : index
    %c8_55 = arith.constant 8 : index
    %c1_56 = arith.constant 1 : index
    %41 = vector.load %arg1[%c0_54, %c8_55, %c1_56] : memref<1x16x256xf32, #tpu.memory_space<vmem>>, vector<1x4x128xf32>
    %42 = vector.shape_cast %41 : vector<1x4x128xf32> to vector<4x128xf32>
    %c16_57 = arith.constant 16 : index
    %c128_58 = arith.constant 128 : index
    %43 = vector.load %arg5[%c16_57, %c128_58] : memref<40x512xf32, #tpu.memory_space<vmem>>, vector<4x128xf32>
    tpu.vector_store %arg5[%c16_57, %c128_58], %42 {strides = array<i32>} : memref<40x512xf32, #tpu.memory_space<vmem>>, vector<4x128xf32>,
    %c0_59 = arith.constant 0 : index
    %c12_60 = arith.constant 12 : index
    %c1_61 = arith.constant 1 : index
    %44 = vector.load %arg1[%c0_59, %c12_60, %c1_61] : memref<1x16x256xf32, #tpu.memory_space<vmem>>, vector<1x4x128xf32>
    %45 = vector.shape_cast %44 : vector<1x4x128xf32> to vector<4x128xf32>
    %c20_62 = arith.constant 20 : index
    %c128_63 = arith.constant 128 : index
    %46 = vector.load %arg5[%c20_62, %c128_63] : memref<40x512xf32, #tpu.memory_space<vmem>>, vector<4x128xf32>
    tpu.vector_store %arg5[%c20_62, %c128_63], %45 {strides = array<i32>} : memref<40x512xf32, #tpu.memory_space<vmem>>, vector<4x128xf32>,
    %c0_64 = arith.constant 0 : index
    %c4_65 = arith.constant 4 : index
    %c8_66 = arith.constant 8 : index
    %47 = vector.load %arg1[%c0_64, %c4_65, %c8_66] : memref<1x16x256xf32, #tpu.memory_space<vmem>>, vector<1x4x128xf32>
    %48 = vector.shape_cast %47 : vector<1x4x128xf32> to vector<4x128xf32>
    %c24_67 = arith.constant 24 : index
    %c128_68 = arith.constant 128 : index
    %49 = vector.load %arg5[%c24_67, %c128_68] : memref<40x512xf32, #tpu.memory_space<vmem>>, vector<4x128xf32>
    tpu.vector_store %arg5[%c24_67, %c128_68], %48 {strides = array<i32>} : memref<40x512xf32, #tpu.memory_space<vmem>>, vector<4x128xf32>,
    %c0_69 = arith.constant 0 : index
    %c0_70 = arith.constant 0 : index
    %c9_71 = arith.constant 9 : index
    %50 = vector.load %arg1[%c0_69, %c0_70, %c9_71] : memref<1x16x256xf32, #tpu.memory_space<vmem>>, vector<1x4x128xf32>
    %51 = vector.shape_cast %50 : vector<1x4x128xf32> to vector<4x128xf32>
    %c28_72 = arith.constant 28 : index
    %c128_73 = arith.constant 128 : index
    %52 = vector.load %arg5[%c28_72, %c128_73] : memref<40x512xf32, #tpu.memory_space<vmem>>, vector<4x128xf32>
    tpu.vector_store %arg5[%c28_72, %c128_73], %51 {strides = array<i32>} : memref<40x512xf32, #tpu.memory_space<vmem>>, vector<4x128xf32>,
    %c0_74 = arith.constant 0 : index
    %c4_75 = arith.constant 4 : index
    %c9_76 = arith.constant 9 : index
    %53 = vector.load %arg1[%c0_74, %c4_75, %c9_76] : memref<1x16x256xf32, #tpu.memory_space<vmem>>, vector<1x4x128xf32>
    %54 = vector.shape_cast %53 : vector<1x4x128xf32> to vector<4x128xf32>
    %c32_77 = arith.constant 32 : index
    %c128_78 = arith.constant 128 : index
    %55 = vector.load %arg5[%c32_77, %c128_78] : memref<40x512xf32, #tpu.memory_space<vmem>>, vector<4x128xf32>
    tpu.vector_store %arg5[%c32_77, %c128_78], %54 {strides = array<i32>} : memref<40x512xf32, #tpu.memory_space<vmem>>, vector<4x128xf32>,
    %c0_79 = arith.constant 0 : index
    %c8_80 = arith.constant 8 : index
    %c0_81 = arith.constant 0 : index
    %56 = vector.load %arg1[%c0_79, %c8_80, %c0_81] : memref<1x16x256xf32, #tpu.memory_space<vmem>>, vector<1x4x128xf32>
    %57 = vector.shape_cast %56 : vector<1x4x128xf32> to vector<4x128xf32>
    %c0_82 = arith.constant 0 : index
    %c256 = arith.constant 256 : index
    %58 = vector.load %arg5[%c0_82, %c256] : memref<40x512xf32, #tpu.memory_space<vmem>>, vector<4x128xf32>
    tpu.vector_store %arg5[%c0_82, %c256], %57 {strides = array<i32>} : memref<40x512xf32, #tpu.memory_space<vmem>>, vector<4x128xf32>,
    %c0_83 = arith.constant 0 : index
    %c12_84 = arith.constant 12 : index
    %c0_85 = arith.constant 0 : index
    %59 = vector.load %arg1[%c0_83, %c12_84, %c0_85] : memref<1x16x256xf32, #tpu.memory_space<vmem>>, vector<1x4x128xf32>
    %60 = vector.shape_cast %59 : vector<1x4x128xf32> to vector<4x128xf32>
    %c4_86 = arith.constant 4 : index
    %c256_87 = arith.constant 256 : index
    %61 = vector.load %arg5[%c4_86, %c256_87] : memref<40x512xf32, #tpu.memory_space<vmem>>, vector<4x128xf32>
    tpu.vector_store %arg5[%c4_86, %c256_87], %60 {strides = array<i32>} : memref<40x512xf32, #tpu.memory_space<vmem>>, vector<4x128xf32>,
    %c0_88 = arith.constant 0 : index
    %c8_89 = arith.constant 8 : index
    %c1_90 = arith.constant 1 : index
    %62 = vector.load %arg1[%c0_88, %c8_89, %c1_90] : memref<1x16x256xf32, #tpu.memory_space<vmem>>, vector<1x4x128xf32>
    %63 = vector.shape_cast %62 : vector<1x4x128xf32> to vector<4x128xf32>
    %c8_91 = arith.constant 8 : index
    %c256_92 = arith.constant 256 : index
    %64 = vector.load %arg5[%c8_91, %c256_92] : memref<40x512xf32, #tpu.memory_space<vmem>>, vector<4x128xf32>
    tpu.vector_store %arg5[%c8_91, %c256_92], %63 {strides = array<i32>} : memref<40x512xf32, #tpu.memory_space<vmem>>, vector<4x128xf32>,
    %c0_93 = arith.constant 0 : index
    %c0_94 = arith.constant 0 : index
    %c8_95 = arith.constant 8 : index
    %65 = vector.load %arg1[%c0_93, %c0_94, %c8_95] : memref<1x16x256xf32, #tpu.memory_space<vmem>>, vector<1x4x128xf32>
    %66 = vector.shape_cast %65 : vector<1x4x128xf32> to vector<4x128xf32>
    %c12_96 = arith.constant 12 : index
    %c256_97 = arith.constant 256 : index
    %67 = vector.load %arg5[%c12_96, %c256_97] : memref<40x512xf32, #tpu.memory_space<vmem>>, vector<4x128xf32>
    tpu.vector_store %arg5[%c12_96, %c256_97], %66 {strides = array<i32>} : memref<40x512xf32, #tpu.memory_space<vmem>>, vector<4x128xf32>,
    %c0_98 = arith.constant 0 : index
    %c4_99 = arith.constant 4 : index
    %c8_100 = arith.constant 8 : index
    %68 = vector.load %arg1[%c0_98, %c4_99, %c8_100] : memref<1x16x256xf32, #tpu.memory_space<vmem>>, vector<1x4x128xf32>
    %69 = vector.shape_cast %68 : vector<1x4x128xf32> to vector<4x128xf32>
    %c16_101 = arith.constant 16 : index
    %c256_102 = arith.constant 256 : index
    %70 = vector.load %arg5[%c16_101, %c256_102] : memref<40x512xf32, #tpu.memory_space<vmem>>, vector<4x128xf32>
    tpu.vector_store %arg5[%c16_101, %c256_102], %69 {strides = array<i32>} : memref<40x512xf32, #tpu.memory_space<vmem>>, vector<4x128xf32>,
    %c0_103 = arith.constant 0 : index
    %c0_104 = arith.constant 0 : index
    %c9_105 = arith.constant 9 : index
    %71 = vector.load %arg1[%c0_103, %c0_104, %c9_105] : memref<1x16x256xf32, #tpu.memory_space<vmem>>, vector<1x4x128xf32>
    %72 = vector.shape_cast %71 : vector<1x4x128xf32> to vector<4x128xf32>
    %c20_106 = arith.constant 20 : index
    %c256_107 = arith.constant 256 : index
    %73 = vector.load %arg5[%c20_106, %c256_107] : memref<40x512xf32, #tpu.memory_space<vmem>>, vector<4x128xf32>
    tpu.vector_store %arg5[%c20_106, %c256_107], %72 {strides = array<i32>} : memref<40x512xf32, #tpu.memory_space<vmem>>, vector<4x128xf32>,
    %c0_108 = arith.constant 0 : index
    %c8_109 = arith.constant 8 : index
    %c8_110 = arith.constant 8 : index
    %74 = vector.load %arg1[%c0_108, %c8_109, %c8_110] : memref<1x16x256xf32, #tpu.memory_space<vmem>>, vector<1x4x128xf32>
    %75 = vector.shape_cast %74 : vector<1x4x128xf32> to vector<4x128xf32>
    %c24_111 = arith.constant 24 : index
    %c256_112 = arith.constant 256 : index
    %76 = vector.load %arg5[%c24_111, %c256_112] : memref<40x512xf32, #tpu.memory_space<vmem>>, vector<4x128xf32>
    tpu.vector_store %arg5[%c24_111, %c256_112], %75 {strides = array<i32>} : memref<40x512xf32, #tpu.memory_space<vmem>>, vector<4x128xf32>,
    %c0_113 = arith.constant 0 : index
    %c12_114 = arith.constant 12 : index
    %c8_115 = arith.constant 8 : index
    %77 = vector.load %arg1[%c0_113, %c12_114, %c8_115] : memref<1x16x256xf32, #tpu.memory_space<vmem>>, vector<1x4x128xf32>
    %78 = vector.shape_cast %77 : vector<1x4x128xf32> to vector<4x128xf32>
    %c28_116 = arith.constant 28 : index
    %c256_117 = arith.constant 256 : index
    %79 = vector.load %arg5[%c28_116, %c256_117] : memref<40x512xf32, #tpu.memory_space<vmem>>, vector<4x128xf32>
    tpu.vector_store %arg5[%c28_116, %c256_117], %78 {strides = array<i32>} : memref<40x512xf32, #tpu.memory_space<vmem>>, vector<4x128xf32>,
    %c0_118 = arith.constant 0 : index
    %c8_119 = arith.constant 8 : index
    %c9_120 = arith.constant 9 : index
    %80 = vector.load %arg1[%c0_118, %c8_119, %c9_120] : memref<1x16x256xf32, #tpu.memory_space<vmem>>, vector<1x4x128xf32>
    %81 = vector.shape_cast %80 : vector<1x4x128xf32> to vector<4x128xf32>
    %c32_121 = arith.constant 32 : index
    %c256_122 = arith.constant 256 : index
    %82 = vector.load %arg5[%c32_121, %c256_122] : memref<40x512xf32, #tpu.memory_space<vmem>>, vector<4x128xf32>
    tpu.vector_store %arg5[%c32_121, %c256_122], %81 {strides = array<i32>} : memref<40x512xf32, #tpu.memory_space<vmem>>, vector<4x128xf32>,
    %c0_123 = arith.constant 0 : index
    %c12_124 = arith.constant 12 : index
    %c0_125 = arith.constant 0 : index
    %83 = vector.load %arg1[%c0_123, %c12_124, %c0_125] : memref<1x16x256xf32, #tpu.memory_space<vmem>>, vector<1x4x128xf32>
    %84 = vector.shape_cast %83 : vector<1x4x128xf32> to vector<4x128xf32>
    %c0_126 = arith.constant 0 : index
    %c384 = arith.constant 384 : index
    %85 = vector.load %arg5[%c0_126, %c384] : memref<40x512xf32, #tpu.memory_space<vmem>>, vector<4x128xf32>
    tpu.vector_store %arg5[%c0_126, %c384], %84 {strides = array<i32>} : memref<40x512xf32, #tpu.memory_space<vmem>>, vector<4x128xf32>,
    %c0_127 = arith.constant 0 : index
    %c8_128 = arith.constant 8 : index
    %c1_129 = arith.constant 1 : index
    %86 = vector.load %arg1[%c0_127, %c8_128, %c1_129] : memref<1x16x256xf32, #tpu.memory_space<vmem>>, vector<1x4x128xf32>
    %87 = vector.shape_cast %86 : vector<1x4x128xf32> to vector<4x128xf32>
    %c4_130 = arith.constant 4 : index
    %c384_131 = arith.constant 384 : index
    %88 = vector.load %arg5[%c4_130, %c384_131] : memref<40x512xf32, #tpu.memory_space<vmem>>, vector<4x128xf32>
    tpu.vector_store %arg5[%c4_130, %c384_131], %87 {strides = array<i32>} : memref<40x512xf32, #tpu.memory_space<vmem>>, vector<4x128xf32>,
    %c0_132 = arith.constant 0 : index
    %c12_133 = arith.constant 12 : index
    %c1_134 = arith.constant 1 : index
    %89 = vector.load %arg1[%c0_132, %c12_133, %c1_134] : memref<1x16x256xf32, #tpu.memory_space<vmem>>, vector<1x4x128xf32>
    %90 = vector.shape_cast %89 : vector<1x4x128xf32> to vector<4x128xf32>
    %c8_135 = arith.constant 8 : index
    %c384_136 = arith.constant 384 : index
    %91 = vector.load %arg5[%c8_135, %c384_136] : memref<40x512xf32, #tpu.memory_space<vmem>>, vector<4x128xf32>
    tpu.vector_store %arg5[%c8_135, %c384_136], %90 {strides = array<i32>} : memref<40x512xf32, #tpu.memory_space<vmem>>, vector<4x128xf32>,
    %c0_137 = arith.constant 0 : index
    %c4_138 = arith.constant 4 : index
    %c8_139 = arith.constant 8 : index
    %92 = vector.load %arg1[%c0_137, %c4_138, %c8_139] : memref<1x16x256xf32, #tpu.memory_space<vmem>>, vector<1x4x128xf32>
    %93 = vector.shape_cast %92 : vector<1x4x128xf32> to vector<4x128xf32>
    %c12_140 = arith.constant 12 : index
    %c384_141 = arith.constant 384 : index
    %94 = vector.load %arg5[%c12_140, %c384_141] : memref<40x512xf32, #tpu.memory_space<vmem>>, vector<4x128xf32>
    tpu.vector_store %arg5[%c12_140, %c384_141], %93 {strides = array<i32>} : memref<40x512xf32, #tpu.memory_space<vmem>>, vector<4x128xf32>,
    %c0_142 = arith.constant 0 : index
    %c0_143 = arith.constant 0 : index
    %c9_144 = arith.constant 9 : index
    %95 = vector.load %arg1[%c0_142, %c0_143, %c9_144] : memref<1x16x256xf32, #tpu.memory_space<vmem>>, vector<1x4x128xf32>
    %96 = vector.shape_cast %95 : vector<1x4x128xf32> to vector<4x128xf32>
    %c16_145 = arith.constant 16 : index
    %c384_146 = arith.constant 384 : index
    %97 = vector.load %arg5[%c16_145, %c384_146] : memref<40x512xf32, #tpu.memory_space<vmem>>, vector<4x128xf32>
    tpu.vector_store %arg5[%c16_145, %c384_146], %96 {strides = array<i32>} : memref<40x512xf32, #tpu.memory_space<vmem>>, vector<4x128xf32>,
    %c0_147 = arith.constant 0 : index
    %c4_148 = arith.constant 4 : index
    %c9_149 = arith.constant 9 : index
    %98 = vector.load %arg1[%c0_147, %c4_148, %c9_149] : memref<1x16x256xf32, #tpu.memory_space<vmem>>, vector<1x4x128xf32>
    %99 = vector.shape_cast %98 : vector<1x4x128xf32> to vector<4x128xf32>
    %c20_150 = arith.constant 20 : index
    %c384_151 = arith.constant 384 : index
    %100 = vector.load %arg5[%c20_150, %c384_151] : memref<40x512xf32, #tpu.memory_space<vmem>>, vector<4x128xf32>
    tpu.vector_store %arg5[%c20_150, %c384_151], %99 {strides = array<i32>} : memref<40x512xf32, #tpu.memory_space<vmem>>, vector<4x128xf32>,
    %c0_152 = arith.constant 0 : index
    %c12_153 = arith.constant 12 : index
    %c8_154 = arith.constant 8 : index
    %101 = vector.load %arg1[%c0_152, %c12_153, %c8_154] : memref<1x16x256xf32, #tpu.memory_space<vmem>>, vector<1x4x128xf32>
    %102 = vector.shape_cast %101 : vector<1x4x128xf32> to vector<4x128xf32>
    %c24_155 = arith.constant 24 : index
    %c384_156 = arith.constant 384 : index
    %103 = vector.load %arg5[%c24_155, %c384_156] : memref<40x512xf32, #tpu.memory_space<vmem>>, vector<4x128xf32>
    tpu.vector_store %arg5[%c24_155, %c384_156], %102 {strides = array<i32>} : memref<40x512xf32, #tpu.memory_space<vmem>>, vector<4x128xf32>,
    %c0_157 = arith.constant 0 : index
    %c8_158 = arith.constant 8 : index
    %c9_159 = arith.constant 9 : index
    %104 = vector.load %arg1[%c0_157, %c8_158, %c9_159] : memref<1x16x256xf32, #tpu.memory_space<vmem>>, vector<1x4x128xf32>
    %105 = vector.shape_cast %104 : vector<1x4x128xf32> to vector<4x128xf32>
    %c28_160 = arith.constant 28 : index
    %c384_161 = arith.constant 384 : index
    %106 = vector.load %arg5[%c28_160, %c384_161] : memref<40x512xf32, #tpu.memory_space<vmem>>, vector<4x128xf32>
    tpu.vector_store %arg5[%c28_160, %c384_161], %105 {strides = array<i32>} : memref<40x512xf32, #tpu.memory_space<vmem>>, vector<4x128xf32>,
    %c0_162 = arith.constant 0 : index
    %c12_163 = arith.constant 12 : index
    %c9_164 = arith.constant 9 : index
    %107 = vector.load %arg1[%c0_162, %c12_163, %c9_164] : memref<1x16x256xf32, #tpu.memory_space<vmem>>, vector<1x4x128xf32>
    %108 = vector.shape_cast %107 : vector<1x4x128xf32> to vector<4x128xf32>
    %c32_165 = arith.constant 32 : index
    %c384_166 = arith.constant 384 : index
    %109 = vector.load %arg5[%c32_165, %c384_166] : memref<40x512xf32, #tpu.memory_space<vmem>>, vector<4x128xf32>
    tpu.vector_store %arg5[%c32_165, %c384_166], %108 {strides = array<i32>} : memref<40x512xf32, #tpu.memory_space<vmem>>, vector<4x128xf32>,
    %c0_167 = arith.constant 0 : index
    %c0_168 = arith.constant 0 : index
    %110 = vector.load %arg2[%c0_167, %c0_168] : memref<8x40xf32, #tpu.memory_space<vmem>>, vector<8x40xf32>
    %c0_169 = arith.constant 0 : index
    %c0_170 = arith.constant 0 : index
    %111 = vector.load %arg5[%c0_169, %c0_170] : memref<40x512xf32, #tpu.memory_space<vmem>>, vector<40x512xf32>
    %cst_171 = arith.constant dense<0.000000e+00> : vector<8x512xf32>
    %112 = tpu.matmul %110, %111, %cst_171 {dimension_numbers = #tpu.dot_dimension_numbers<[1], [0], [0], [1], [0, 0, 1, 1], [], []>} : vector<8x40xf32>, vector<40x512xf32>, vector<8x512xf32> -> vector<8x512xf32>
    %113 = vector.extract_strided_slice %112 {offsets = [0, 0], sizes = [8, 128], strides = [1, 1]} : vector<8x512xf32> to vector<8x128xf32>
    %114 = vector.extract_strided_slice %112 {offsets = [0, 128], sizes = [8, 128], strides = [1, 1]} : vector<8x512xf32> to vector<8x128xf32>
    %115 = arith.maximumf %113, %114 : vector<8x128xf32>
    %116 = vector.extract_strided_slice %112 {offsets = [0, 256], sizes = [8, 128], strides = [1, 1]} : vector<8x512xf32> to vector<8x128xf32>
    %117 = vector.extract_strided_slice %112 {offsets = [0, 384], sizes = [8, 128], strides = [1, 1]} : vector<8x512xf32> to vector<8x128xf32>
    %118 = arith.maximumf %116, %117 : vector<8x128xf32>
    %119 = arith.maximumf %115, %118 : vector<8x128xf32>
    %c0_172 = arith.constant 0 : index
    %c0_173 = arith.constant 0 : index
    %120 = vector.load %arg3[%c0_172, %c0_173] : memref<8x1xf32, #tpu.memory_space<vmem>>, vector<8x1xf32>
    %121 = vector.broadcast %120 : vector<8x1xf32> to vector<8x128xf32>
    %122 = arith.addf %119, %121 : vector<8x128xf32>
    %cst_174 = arith.constant 0.000000e+00 : f32
    %123 = vector.broadcast %cst_174 : f32 to vector<8x128xf32>
    %124 = arith.maximumf %122, %123 : vector<8x128xf32>
    %c0_175 = arith.constant 0 : index
    %c0_176 = arith.constant 0 : index
    %c0_177 = arith.constant 0 : index
    %125 = vector.load %arg4[%c0_175, %c0_176, %c0_177] : memref<1x8x128xf32, #tpu.memory_space<vmem>>, vector<1x8x128xf32>
    %126 = vector.shape_cast %125 : vector<1x8x128xf32> to vector<8x128xf32>
    %127 = vector.shape_cast %124 : vector<8x128xf32> to vector<1x8x128xf32>
    tpu.vector_store %arg4[%c0_175, %c0_176, %c0_177], %127 {strides = array<i32>} : memref<1x8x128xf32, #tpu.memory_space<vmem>>, vector<1x8x128xf32>,
    return
  }
  func.func @transform_0(%arg0: i32) -> (i32, i32, i32) {
    %c0_i32 = arith.constant 0 : i32
    %c0_i32_0 = arith.constant 0 : i32
    %c0_i32_1 = arith.constant 0 : i32
    return %arg0, %c0_i32, %c0_i32_0 : i32, i32, i32
  }
  func.func @transform_1(%arg0: i32) -> (i32, i32) {
    %c0_i32 = arith.constant 0 : i32
    %c0_i32_0 = arith.constant 0 : i32
    %c0_i32_1 = arith.constant 0 : i32
    return %c0_i32, %c0_i32_0 : i32, i32
  }
  func.func @transform_2(%arg0: i32) -> (i32, i32) {
    %c0_i32 = arith.constant 0 : i32
    %c0_i32_0 = arith.constant 0 : i32
    %c0_i32_1 = arith.constant 0 : i32
    return %c0_i32, %c0_i32_0 : i32, i32
  }
  func.func @transform_3(%arg0: i32) -> (i32, i32, i32) {
    %c0_i32 = arith.constant 0 : i32
    %c0_i32_0 = arith.constant 0 : i32
    %c0_i32_1 = arith.constant 0 : i32
    return %arg0, %c0_i32, %c0_i32_0 : i32, i32, i32
  }
}

</mosaic_0001>

<llo_original>
// kernel: conv_block_forward.1
$region0: #{conv_block_forward.1}
  #allocation0 [shape = 'u32[]', space=smem, size = 0x4, offset = 0x4, fixed_abs, tag = 'smem constant byte address 0x4 - core index']
  #allocation1 [shape = 'u32[144,128]{1,0:T(1,128)}', space=vmem, size = 0x12000, scoped, tag = 'internal scratch']
  #allocation2 [shape = 'f32[40,512]{1,0:T(8,128)}', space=vmem, size = 0x14000, scoped, tag = 'scratch operand']
  %s0 = inlined_call_operand.vmem [shape: f32[2,16,256], index: 0, kind: input, shape index: {}]
  %s1 = inlined_call_operand.vmem [shape: f32[8,40], index: 1, kind: input, shape index: {}]
  %s2 = inlined_call_operand.vmem [shape: f32[8,1], index: 2, kind: input, shape index: {}]
  %s3 = inlined_call_operand.vmem [shape: f32[2,8,128], index: 3, kind: output, shape index: {}]
  %s4 = sld [smem:[#allocation0]]
  $region45: #{conv_block_forward.1} parent=0
    _
  %s6 = ssub.s32 1, %s4
  %s7 = scalar_select 0, %s6, %s4
  loop: start=0, step=1, limit=4
  $region2: #{conv_block_forward.1} parent=0 // loop_pre_header
    _
  $region3: #{conv_block_forward.1} parent=0 // loop_header
    %s9 = sphi 0, %s13
    %p10 = scmp.ge.s32.totalorder %s9, 4
    %s19 = sphi 0, %s21
    %s22 = sphi 0, %s19
    %s23 = sphi 0, %s22
    %s39 = sphi 0, %s23
    %s43 = sphi 0, %s43
    %s45 = sphi 0, %s43
    %s46 = sphi 0, %s45
    %s60 = sphi 0, %s46
    %s64 = sphi 0, %s64
    %s66 = sphi 0, %s64
    %s67 = sphi 0, %s66
    %s81 = sphi 0, %s67
    %s87 = sphi 0, %s89
    %s90 = sphi 0, %s87
    %s91 = sphi 0, %s90
    %s107 = sphi 0, %s91
  $region4: #{conv_block_forward.1} parent=0 // loop_header_branch
    %12 = sbr.rel (%p10) target = $region8
  $region5: #{conv_block_forward.1} parent=0 // loop_body
    %s14 = ssub.s32 %s9, 1
    %s15 = ssub.s32 %s9, 2
    %s16 = sadd.s32 %s9, 1
    %s17 = ssub.s32 %s9, %s16
    %p18 = scmp.eq.s32.totalorder %s17, 0
    %s20 = sadd.s32 %s19, 1
    %s21 = scalar_select %p18, %s19, %s20
    %p24 = pneg %p18
    %p25 = scmp.eq.s32.totalorder %s9, 1
    %p26 = por %p24, %p25
    %p27 = scmp.ne.s32.totalorder %s19, %s22
    %p28 = scmp.eq.s32.totalorder %s9, 0
    %p29 = por %p27, %p28
    %p30 = scmp.ne.s32.totalorder %s19, %s22
    %p31 = scmp.eq.s32.totalorder %s14, 1
    %p32 = por %p30, %p31
    %p33 = scmp.ne.s32.totalorder %s22, %s23
    %p34 = scmp.eq.s32.totalorder %s14, 0
    %p35 = por %p33, %p34
    %p36 = scmp.ne.s32.totalorder %s22, %s23
    %p37 = scmp.eq.s32.totalorder %s15, 1
    %p38 = por %p36, %p37
    %p40 = scmp.ne.s32.totalorder %s23, %s39
    %p41 = scmp.eq.s32.totalorder %s15, 0
    %p42 = por %p40, %p41
    %s44 = sadd.s32 %s43, 1
    %p47 = scmp.eq.s32.totalorder %s9, 1
    %p48 = scmp.ne.s32.totalorder %s43, %s45
    %p49 = scmp.eq.s32.totalorder %s9, 0
    %p50 = por %p48, %p49
    %p51 = scmp.ne.s32.totalorder %s43, %s45
    %p52 = scmp.eq.s32.totalorder %s14, 1
    %p53 = por %p51, %p52
    %p54 = scmp.ne.s32.totalorder %s45, %s46
    %p55 = scmp.eq.s32.totalorder %s14, 0
    %p56 = por %p54, %p55
    %p57 = scmp.ne.s32.totalorder %s45, %s46
    %p58 = scmp.eq.s32.totalorder %s15, 1
    %p59 = por %p57, %p58
    %p61 = scmp.ne.s32.totalorder %s46, %s60
    %p62 = scmp.eq.s32.totalorder %s15, 0
    %p63 = por %p61, %p62
    %s65 = sadd.s32 %s64, 1
    %p68 = scmp.eq.s32.totalorder %s9, 1
    %p69 = scmp.ne.s32.totalorder %s64, %s66
    %p70 = scmp.eq.s32.totalorder %s9, 0
    %p71 = por %p69, %p70
    %p72 = scmp.ne.s32.totalorder %s64, %s66
    %p73 = scmp.eq.s32.totalorder %s14, 1
    %p74 = por %p72, %p73
    %p75 = scmp.ne.s32.totalorder %s66, %s67
    %p76 = scmp.eq.s32.totalorder %s14, 0
    %p77 = por %p75, %p76
    %p78 = scmp.ne.s32.totalorder %s66, %s67
    %p79 = scmp.eq.s32.totalorder %s15, 1
    %p80 = por %p78, %p79
    %p82 = scmp.ne.s32.totalorder %s67, %s81
    %p83 = scmp.eq.s32.totalorder %s15, 0
    %p84 = por %p82, %p83
    %s85 = ssub.s32 %s9, %s16
    %p86 = scmp.eq.s32.totalorder %s85, 0
    %s88 = sadd.s32 %s87, 1
    %s89 = scalar_select %p86, %s87, %s88
    %p92 = pneg %p86
    %p93 = scmp.eq.s32.totalorder %s9, 1
    %p94 = por %p92, %p93
    %p95 = scmp.ne.s32.totalorder %s87, %s90
    %p96 = scmp.eq.s32.totalorder %s9, 0
    %p97 = por %p95, %p96
    %p98 = scmp.ne.s32.totalorder %s87, %s90
    %p99 = scmp.eq.s32.totalorder %s14, 1
    %p100 = por %p98, %p99
    %p101 = scmp.ne.s32.totalorder %s90, %s91
    %p102 = scmp.eq.s32.totalorder %s14, 0
    %p103 = por %p101, %p102
    %p104 = scmp.ne.s32.totalorder %s90, %s91
    %p105 = scmp.eq.s32.totalorder %s15, 1
    %p106 = por %p104, %p105
    %p108 = scmp.ne.s32.totalorder %s91, %s107
    %p109 = scmp.eq.s32.totalorder %s15, 0
    %p110 = por %p108, %p109
    %p111 = scmp.le.s32.totalorder 1, %s9
    %p112 = scmp.lt.s32.totalorder %s9, 3
    %p113 = pnand %p111, %p112
    %p114 = pneg %p113
    // Predicated region
    $region9: #{conv_block_forward.1} parent=5 // pred_check
      _
    $region10: #{conv_block_forward.1} parent=5 // pred_check_branch
      %116 = sbr.rel (%p113) target = $region12
    $region11: #{conv_block_forward.1} parent=5 // pred_region
      %s117 = ssub.s32 %s9, 1
      // Predicated region
      $region13: #{conv_block_forward.1} parent=11 // pred_check
        %p118 = pneg %p56
      $region14: #{conv_block_forward.1} parent=11 // pred_check_branch
        %120 = sbr.rel (%p118) target = $region16
      $region15: #{conv_block_forward.1} parent=11 // pred_region
        _
      $region16: #{conv_block_forward.1} parent=11 // pred_fallthru
        _
      // Predicated region
      $region17: #{conv_block_forward.1} parent=11 // pred_check
        %p121 = pneg %p77
      $region18: #{conv_block_forward.1} parent=11 // pred_check_branch
        %123 = sbr.rel (%p121) target = $region20
      $region19: #{conv_block_forward.1} parent=11 // pred_region
        _
      $region20: #{conv_block_forward.1} parent=11 // pred_fallthru
        _
    $region12: #{conv_block_forward.1} parent=5 // pred_fallthru
      _
    %p124 = scmp.lt.s32.totalorder %s9, 2
    // Predicated region
    $region21: #{conv_block_forward.1} parent=5 // pred_check
      %p125 = pneg %p124
    $region22: #{conv_block_forward.1} parent=5 // pred_check_branch
      %127 = sbr.rel (%p125) target = $region24
    $region23: #{conv_block_forward.1} parent=5 // pred_region
      // Predicated region
      $region25: #{conv_block_forward.1} parent=23 // pred_check
        %p128 = pneg %p29
      $region26: #{conv_block_forward.1} parent=23 // pred_check_branch
        %130 = sbr.rel (%p128) target = $region28
      $region27: #{conv_block_forward.1} parent=23 // pred_region
        %p131 = scmp.lt.s32.totalorder %s9, 1
        %s132 = scalar_select %p131, %s9, 1
        %s133 = smul.addr %s132, 4
        %s134 = smul.addr %s133, 8
        %s135 = scalar_lea.vmem %s0, %s134
      $region28: #{conv_block_forward.1} parent=23 // pred_fallthru
        _
    $region24: #{conv_block_forward.1} parent=5 // pred_fallthru
      _
    %p136 = scmp.le.s32.totalorder 1, %s9
    %p137 = scmp.lt.s32.totalorder %s9, 3
    %p138 = pnand %p136, %p137
    %p139 = pneg %p138
    // Predicated region
    $region29: #{conv_block_forward.1} parent=5 // pred_check
      _
    $region30: #{conv_block_forward.1} parent=5 // pred_check_branch
      %141 = sbr.rel (%p138) target = $region32
    $region31: #{conv_block_forward.1} parent=5 // pred_region
      %s142 = ssub.s32 %s9, 1
      %p143 = scmp.lt.s32.totalorder %s14, 1
      %s144 = scalar_select %p143, %s14, 1
      %s145 = smul.addr %s144, 4
      %s146 = smul.addr %s145, 8
      %s147 = scalar_lea.vmem %s0, %s146
      %p148 = pneg %p35
      %p149 = pneg %p32
      %p150 = pneg %p56
      %p151 = pneg %p53
      %p152 = pneg %p77
      %p153 = pneg %p74
      %p154 = pneg %p103
      %p155 = pneg %p100
      %p156 = scmp.lt.s32.totalorder %s14, 1
      %s157 = scalar_select %p156, %s14, 1
      %s158 = smul.addr %s157, 8
      %s159 = scalar_lea.vmem %s3, %s158
      %p160 = scmp.lt.s32.totalorder %s14, 1
      %s161 = scalar_select %p160, %s14, 1
      %s162 = smul.addr %s161, 4
      %s163 = smul.addr %s162, 8
      %s164 = scalar_lea.vmem %s0, %s163
      %p165 = scmp.lt.s32.totalorder %s14, 1
      %s166 = scalar_select %p165, %s14, 1
      %s167 = smul.addr %s166, 8
      %s168 = scalar_lea.vmem %s3, %s167
      %169 = vst [vmem:[#allocation2 + $0x80] sm:$0xf0] 0.0
      %170 = vst [vmem:[#allocation2 + $0x88] sm:$0xf0] 0.0
      %171 = vst [vmem:[#allocation2 + $0x90] sm:$0xf0] 0.0
      %172 = vst [vmem:[#allocation2 + $0x98] sm:$0xf0] 0.0
      %v173 = vld [vmem:[%s164] sm:$0xf]
      %174 = vst [vmem:[#allocation2] sm:$0xf] %v173
      %v175 = vld [vmem:[%s164] sm:$0xf0]
      %176 = vst [vmem:[#allocation2] sm:$0xf0] %v175
      %v177 = vld [vmem:[%s164] sm:$0xf]
      %v178 = vld [vmem:[%s164 + $0x8] sm:$0xf]
      %181 = vrot.lane.b32.xlu0 %v177, 127
      %v182 = vpop.permute.xlu0 %181
      %183 = vrot.lane.b32.xlu0 %v178, 127
      %v184 = vpop.permute.xlu0 %183
      %vm185 = vcmask 1039360
      %v186 = vsel %vm185, %v182, %v184
      %188 = vst [vmem:[#allocation2 + $0x20] sm:$0xf] %v186
      %v189 = vld [vmem:[%s164 + $0x10] sm:$0xf]
      %v191 = vrot.slane %v189, 4
      %193 = vst [vmem:[#allocation2 + $0x20] sm:$0xf0] %v191
      %v194 = vld [vmem:[%s164 + $0x10] sm:$0xf0]
      %v196 = vrot.slane %v194, 4
      %198 = vst [vmem:[#allocation2 + $0x40] sm:$0xf] %v196
      %v199 = vld [vmem:[%s164 + $0x10] sm:$0xf]
      %v200 = vld [vmem:[%s164 + $0x18] sm:$0xf]
      %v203 = vrot.slane %v199, 4
      %v204 = vrot.slane %v200, 4
      %205 = vrot.lane.b32.xlu0 %v203, 127
      %v206 = vpop.permute.xlu0 %205
      %207 = vrot.lane.b32.xlu0 %v204, 127
      %v208 = vpop.permute.xlu0 %207
      %v209 = vsel %vm185, %v206, %v208
      %211 = vst [vmem:[#allocation2 + $0x40] sm:$0xf0] %v209
      %v212 = vld [vmem:[%s164] sm:$0xf]
      %v213 = vld [vmem:[%s164 + $0x8] sm:$0xf]
      %216 = vrot.lane.b32.xlu0 %v212, 120
      %v217 = vpop.permute.xlu0 %216
      %218 = vrot.lane.b32.xlu0 %v213, 120
      %v219 = vpop.permute.xlu0 %218
      %vm220 = vcmask 982016
      %v221 = vsel %vm220, %v217, %v219
      %223 = vst [vmem:[#allocation2 + $0x60] sm:$0xf] %v221
      %v224 = vld [vmem:[%s164] sm:$0xf0]
      %v225 = vld [vmem:[%s164 + $0x8] sm:$0xf0]
      %228 = vrot.lane.b32.xlu0 %v224, 120
      %v229 = vpop.permute.xlu0 %228
      %230 = vrot.lane.b32.xlu0 %v225, 120
      %v231 = vpop.permute.xlu0 %230
      %v232 = vsel %vm220, %v229, %v231
      %234 = vst [vmem:[#allocation2 + $0x60] sm:$0xf0] %v232
      %v235 = vld [vmem:[%s164] sm:$0xf]
      %v236 = vld [vmem:[%s164 + $0x8] sm:$0xf]
      %239 = vrot.lane.b32.xlu0 %v235, 119
      %v240 = vpop.permute.xlu0 %239
      %241 = vrot.lane.b32.xlu0 %v236, 119
      %v242 = vpop.permute.xlu0 %241
      %vm243 = vcmask 973824
      %v244 = vsel %vm243, %v240, %v242
      %246 = vst [vmem:[#allocation2 + $0x80] sm:$0xf] %v244
      %v247 = vld [vmem:[%s164] sm:$0xf0]
      %v249 = vrot.slane %v247, 4
      %251 = vst [vmem:[#allocation2 + $0x8] sm:$0xf] %v249
      %v252 = vld [vmem:[%s164] sm:$0xf]
      %v253 = vld [vmem:[%s164 + $0x8] sm:$0xf]
      %v256 = vrot.slane %v252, 4
      %v257 = vrot.slane %v253, 4
      %258 = vrot.lane.b32.xlu0 %v256, 127
      %v259 = vpop.permute.xlu0 %258
      %260 = vrot.lane.b32.xlu0 %v257, 127
      %v261 = vpop.permute.xlu0 %260
      %v262 = vsel %vm185, %v259, %v261
      %264 = vst [vmem:[#allocation2 + $0x8] sm:$0xf0] %v262
      %v265 = vld [vmem:[%s164] sm:$0xf0]
      %v266 = vld [vmem:[%s164 + $0x8] sm:$0xf0]
      %v269 = vrot.slane %v265, 4
      %v270 = vrot.slane %v266, 4
      %271 = vrot.lane.b32.xlu0 %v269, 127
      %v272 = vpop.permute.xlu0 %271
      %273 = vrot.lane.b32.xlu0 %v270, 127
      %v274 = vpop.permute.xlu0 %273
      %v275 = vsel %vm185, %v272, %v274
      %277 = vst [vmem:[#allocation2 + $0x28] sm:$0xf] %v275
      %v278 = vld [vmem:[%s164 + $0x10] sm:$0xf0]
      %279 = vst [vmem:[#allocation2 + $0x28] sm:$0xf0] %v278
      %v280 = vld [vmem:[%s164 + $0x10] sm:$0xf]
      %v281 = vld [vmem:[%s164 + $0x18] sm:$0xf]
      %284 = vrot.lane.b32.xlu0 %v280, 127
      %v285 = vpop.permute.xlu0 %284
      %286 = vrot.lane.b32.xlu0 %v281, 127
      %v287 = vpop.permute.xlu0 %286
      %v288 = vsel %vm185, %v285, %v287
      %290 = vst [vmem:[#allocation2 + $0x48] sm:$0xf] %v288
      %v291 = vld [vmem:[%s164 + $0x10] sm:$0xf0]
      %v292 = vld [vmem:[%s164 + $0x18] sm:$0xf0]
      %295 = vrot.lane.b32.xlu0 %v291, 127
      %v296 = vpop.permute.xlu0 %295
      %297 = vrot.lane.b32.xlu0 %v292, 127
      %v298 = vpop.permute.xlu0 %297
      %v299 = vsel %vm185, %v296, %v298
      %301 = vst [vmem:[#allocation2 + $0x48] sm:$0xf0] %v299
      %v302 = vld [vmem:[%s164] sm:$0xf0]
      %v303 = vld [vmem:[%s164 + $0x8] sm:$0xf0]
      %v306 = vrot.slane %v302, 4
      %v307 = vrot.slane %v303, 4
      %308 = vrot.lane.b32.xlu0 %v306, 120
      %v309 = vpop.permute.xlu0 %308
      %310 = vrot.lane.b32.xlu0 %v307, 120
      %v311 = vpop.permute.xlu0 %310
      %v312 = vsel %vm220, %v309, %v311
      %314 = vst [vmem:[#allocation2 + $0x68] sm:$0xf] %v312
      %v315 = vld [vmem:[%s164] sm:$0xf]
      %v316 = vld [vmem:[%s164 + $0x8] sm:$0xf]
      %v319 = vrot.slane %v315, 4
      %v320 = vrot.slane %v316, 4
      %321 = vrot.lane.b32.xlu0 %v319, 119
      %v322 = vpop.permute.xlu0 %321
      %323 = vrot.lane.b32.xlu0 %v320, 119
      %v324 = vpop.permute.xlu0 %323
      %v325 = vsel %vm243, %v322, %v324
      %327 = vst [vmem:[#allocation2 + $0x68] sm:$0xf0] %v325
      %v328 = vld [vmem:[%s164] sm:$0xf0]
      %v329 = vld [vmem:[%s164 + $0x8] sm:$0xf0]
      %v332 = vrot.slane %v328, 4
      %v333 = vrot.slane %v329, 4
      %334 = vrot.lane.b32.xlu0 %v332, 119
      %v335 = vpop.permute.xlu0 %334
      %336 = vrot.lane.b32.xlu0 %v333, 119
      %v337 = vpop.permute.xlu0 %336
      %v338 = vsel %vm243, %v335, %v337
      %340 = vst [vmem:[#allocation2 + $0x88] sm:$0xf] %v338
      %v341 = vld [vmem:[%s164 + $0x10] sm:$0xf]
      %342 = vst [vmem:[#allocation2 + $0x10] sm:$0xf] %v341
      %v343 = vld [vmem:[%s164 + $0x10] sm:$0xf0]
      %344 = vst [vmem:[#allocation2 + $0x10] sm:$0xf0] %v343
      %v345 = vld [vmem:[%s164 + $0x10] sm:$0xf]
      %v346 = vld [vmem:[%s164 + $0x18] sm:$0xf]
      %349 = vrot.lane.b32.xlu0 %v345, 127
      %v350 = vpop.permute.xlu0 %349
      %351 = vrot.lane.b32.xlu0 %v346, 127
      %v352 = vpop.permute.xlu0 %351
      %v353 = vsel %vm185, %v350, %v352
      %355 = vst [vmem:[#allocation2 + $0x30] sm:$0xf] %v353
      %v356 = vld [vmem:[%s164] sm:$0xf]
      %v357 = vld [vmem:[%s164 + $0x8] sm:$0xf]
      %v360 = vrot.slane %v356, 4
      %v361 = vrot.slane %v357, 4
      %362 = vrot.lane.b32.xlu0 %v360, 120
      %v363 = vpop.permute.xlu0 %362
      %364 = vrot.lane.b32.xlu0 %v361, 120
      %v365 = vpop.permute.xlu0 %364
      %v366 = vsel %vm220, %v363, %v365
      %368 = vst [vmem:[#allocation2 + $0x30] sm:$0xf0] %v366
      %v369 = vld [vmem:[%s164] sm:$0xf0]
      %v370 = vld [vmem:[%s164 + $0x8] sm:$0xf0]
      %v373 = vrot.slane %v369, 4
      %v374 = vrot.slane %v370, 4
      %375 = vrot.lane.b32.xlu0 %v373, 120
      %v376 = vpop.permute.xlu0 %375
      %377 = vrot.lane.b32.xlu0 %v374, 120
      %v378 = vpop.permute.xlu0 %377
      %v379 = vsel %vm220, %v376, %v378
      %381 = vst [vmem:[#allocation2 + $0x50] sm:$0xf] %v379
      %v382 = vld [vmem:[%s164] sm:$0xf]
      %v383 = vld [vmem:[%s164 + $0x8] sm:$0xf]
      %v386 = vrot.slane %v382, 4
      %v387 = vrot.slane %v383, 4
      %388 = vrot.lane.b32.xlu0 %v386, 119
      %v389 = vpop.permute.xlu0 %388
      %390 = vrot.lane.b32.xlu0 %v387, 119
      %v391 = vpop.permute.xlu0 %390
      %v392 = vsel %vm243, %v389, %v391
      %394 = vst [vmem:[#allocation2 + $0x50] sm:$0xf0] %v392
      %v395 = vld [vmem:[%s164 + $0x10] sm:$0xf]
      %v396 = vld [vmem:[%s164 + $0x18] sm:$0xf]
      %399 = vrot.lane.b32.xlu0 %v395, 120
      %v400 = vpop.permute.xlu0 %399
      %401 = vrot.lane.b32.xlu0 %v396, 120
      %v402 = vpop.permute.xlu0 %401
      %v403 = vsel %vm220, %v400, %v402
      %405 = vst [vmem:[#allocation2 + $0x70] sm:$0xf] %v403
      %v406 = vld [vmem:[%s164 + $0x10] sm:$0xf0]
      %v407 = vld [vmem:[%s164 + $0x18] sm:$0xf0]
      %410 = vrot.lane.b32.xlu0 %v406, 120
      %v411 = vpop.permute.xlu0 %410
      %412 = vrot.lane.b32.xlu0 %v407, 120
      %v413 = vpop.permute.xlu0 %412
      %v414 = vsel %vm220, %v411, %v413
      %416 = vst [vmem:[#allocation2 + $0x70] sm:$0xf0] %v414
      %v417 = vld [vmem:[%s164 + $0x10] sm:$0xf]
      %v418 = vld [vmem:[%s164 + $0x18] sm:$0xf]
      %421 = vrot.lane.b32.xlu0 %v417, 119
      %v422 = vpop.permute.xlu0 %421
      %423 = vrot.lane.b32.xlu0 %v418, 119
      %v424 = vpop.permute.xlu0 %423
      %v425 = vsel %vm243, %v422, %v424
      %427 = vst [vmem:[#allocation2 + $0x90] sm:$0xf] %v425
      %v428 = vld [vmem:[%s164 + $0x10] sm:$0xf0]
      %v430 = vrot.slane %v428, 4
      %432 = vst [vmem:[#allocation2 + $0x18] sm:$0xf] %v430
      %v433 = vld [vmem:[%s164 + $0x10] sm:$0xf]
      %v434 = vld [vmem:[%s164 + $0x18] sm:$0xf]
      %v437 = vrot.slane %v433, 4
      %v438 = vrot.slane %v434, 4
      %439 = vrot.lane.b32.xlu0 %v437, 127
      %v440 = vpop.permute.xlu0 %439
      %441 = vrot.lane.b32.xlu0 %v438, 127
      %v442 = vpop.permute.xlu0 %441
      %v443 = vsel %vm185, %v440, %v442
      %445 = vst [vmem:[#allocation2 + $0x18] sm:$0xf0] %v443
      %v446 = vld [vmem:[%s164 + $0x10] sm:$0xf0]
      %v447 = vld [vmem:[%s164 + $0x18] sm:$0xf0]
      %v450 = vrot.slane %v446, 4
      %v451 = vrot.slane %v447, 4
      %452 = vrot.lane.b32.xlu0 %v450, 127
      %v453 = vpop.permute.xlu0 %452
      %454 = vrot.lane.b32.xlu0 %v451, 127
      %v455 = vpop.permute.xlu0 %454
      %v456 = vsel %vm185, %v453, %v455
      %458 = vst [vmem:[#allocation2 + $0x38] sm:$0xf] %v456
      %v459 = vld [vmem:[%s164] sm:$0xf0]
      %v460 = vld [vmem:[%s164 + $0x8] sm:$0xf0]
      %463 = vrot.lane.b32.xlu0 %v459, 120
      %v464 = vpop.permute.xlu0 %463
      %465 = vrot.lane.b32.xlu0 %v460, 120
      %v466 = vpop.permute.xlu0 %465
      %v467 = vsel %vm220, %v464, %v466
      %469 = vst [vmem:[#allocation2 + $0x38] sm:$0xf0] %v467
      %v470 = vld [vmem:[%s164] sm:$0xf]
      %v471 = vld [vmem:[%s164 + $0x8] sm:$0xf]
      %474 = vrot.lane.b32.xlu0 %v470, 119
      %v475 = vpop.permute.xlu0 %474
      %476 = vrot.lane.b32.xlu0 %v471, 119
      %v477 = vpop.permute.xlu0 %476
      %v478 = vsel %vm243, %v475, %v477
      %480 = vst [vmem:[#allocation2 + $0x58] sm:$0xf] %v478
      %v481 = vld [vmem:[%s164] sm:$0xf0]
      %v482 = vld [vmem:[%s164 + $0x8] sm:$0xf0]
      %485 = vrot.lane.b32.xlu0 %v481, 119
      %v486 = vpop.permute.xlu0 %485
      %487 = vrot.lane.b32.xlu0 %v482, 119
      %v488 = vpop.permute.xlu0 %487
      %v489 = vsel %vm243, %v486, %v488
      %491 = vst [vmem:[#allocation2 + $0x58] sm:$0xf0] %v489
      %v492 = vld [vmem:[%s164 + $0x10] sm:$0xf0]
      %v493 = vld [vmem:[%s164 + $0x18] sm:$0xf0]
      %v496 = vrot.slane %v492, 4
      %v497 = vrot.slane %v493, 4
      %498 = vrot.lane.b32.xlu0 %v496, 120
      %v499 = vpop.permute.xlu0 %498
      %500 = vrot.lane.b32.xlu0 %v497, 120
      %v501 = vpop.permute.xlu0 %500
      %v502 = vsel %vm220, %v499, %v501
      %504 = vst [vmem:[#allocation2 + $0x78] sm:$0xf] %v502
      %v505 = vld [vmem:[%s164 + $0x10] sm:$0xf]
      %v506 = vld [vmem:[%s164 + $0x18] sm:$0xf]
      %v509 = vrot.slane %v505, 4
      %v510 = vrot.slane %v506, 4
      %511 = vrot.lane.b32.xlu0 %v509, 119
      %v512 = vpop.permute.xlu0 %511
      %513 = vrot.lane.b32.xlu0 %v510, 119
      %v514 = vpop.permute.xlu0 %513
      %v515 = vsel %vm243, %v512, %v514
      %517 = vst [vmem:[#allocation2 + $0x78] sm:$0xf0] %v515
      %v518 = vld [vmem:[%s164 + $0x10] sm:$0xf0]
      %v519 = vld [vmem:[%s164 + $0x18] sm:$0xf0]
      %v522 = vrot.slane %v518, 4
      %v523 = vrot.slane %v519, 4
      %524 = vrot.lane.b32.xlu0 %v522, 119
      %v525 = vpop.permute.xlu0 %524
      %526 = vrot.lane.b32.xlu0 %v523, 119
      %v527 = vpop.permute.xlu0 %526
      %v528 = vsel %vm243, %v525, %v527
      %530 = vst [vmem:[#allocation2 + $0x98] sm:$0xf] %v528
      %v531 = vld [vmem:[%s1] sm:$0xff]
      %v532 = vld [vmem:[#allocation2] sm:$0xff]
      %v533 = vld [vmem:[#allocation2 + $0x8] sm:$0xff]
      %v534 = vld [vmem:[#allocation2 + $0x10] sm:$0xff]
      %v535 = vld [vmem:[#allocation2 + $0x18] sm:$0xff]
      %v536 = vld [vmem:[#allocation2 + $0x20] sm:$0xff]
      %v537 = vld [vmem:[#allocation2 + $0x28] sm:$0xff]
      %v538 = vld [vmem:[#allocation2 + $0x30] sm:$0xff]
      %v539 = vld [vmem:[#allocation2 + $0x38] sm:$0xff]
      %v540 = vld [vmem:[#allocation2 + $0x40] sm:$0xff]
      %v541 = vld [vmem:[#allocation2 + $0x48] sm:$0xff]
      %v542 = vld [vmem:[#allocation2 + $0x50] sm:$0xff]
      %v543 = vld [vmem:[#allocation2 + $0x58] sm:$0xff]
      %v544 = vld [vmem:[#allocation2 + $0x60] sm:$0xff]
      %v545 = vld [vmem:[#allocation2 + $0x68] sm:$0xff]
      %v546 = vld [vmem:[#allocation2 + $0x70] sm:$0xff]
      %v547 = vld [vmem:[#allocation2 + $0x78] sm:$0xff]
      %v548 = vld [vmem:[#allocation2 + $0x80] sm:$0xff]
      %v549 = vld [vmem:[#allocation2 + $0x88] sm:$0xff]
      %v550 = vld [vmem:[#allocation2 + $0x90] sm:$0xff]
      %v551 = vld [vmem:[#allocation2 + $0x98] sm:$0xff]
      %vm552 = vcmask 326656
      %v554 = vsel %vm552, %v531, 0
      %556 = vmatprep.subr.mxu0 %v533
      %557 = vmatpush1.msra.mxu0 %v532
      %558 = vmatprep.subr.mxu0 %v537
      %559 = vmatpush1.msra.mxu0 %v536
      %560 = vmatprep.subr.mxu0 %v541
      %561 = vmatpush1.msra.mxu0 %v540
      %562 = vmatprep.subr.mxu0 %v545
      %563 = vmatpush1.msra.mxu0 %v544
      %564 = vmatprep.subr.mxu0 %v549
      %565 = vmatpush1.msra.mxu0 %v548
      %566 = vmatprep.subr.mxu0 0.0
      %567 = vmatpush1.msra.mxu0 0.0
      %568 = vmatprep.subr.mxu0 0.0
      %569 = vmatpush1.msra.mxu0 0.0
      %570 = vmatprep.subr.mxu0 0.0
      %571 = vmatpush1.msra.mxu0 0.0
      %572 = vmatprep.subr.mxu0 0.0
      %573 = vmatpush1.msra.mxu0 0.0
      %574 = vmatprep.subr.mxu0 0.0
      %575 = vmatpush1.msra.mxu0 0.0
      %576 = vmatprep.subr.mxu0 0.0
      %577 = vmatpush1.msra.mxu0 0.0
      %578 = vmatprep.subr.mxu0 0.0
      %579 = vmatpush1.msra.mxu0 0.0
      %580 = vmatprep.subr.mxu0 0.0
      %581 = vmatpush1.msra.mxu0 0.0
      %582 = vmatprep.subr.mxu0 0.0
      %583 = vmatpush1.msra.mxu0 0.0
      %584 = vmatprep.subr.mxu0 0.0
      %585 = vmatpush1.msra.mxu0 0.0
      %586 = vmatprep.subr.mxu0 0.0
      %587 = vmatpush1.msra.mxu0 0.0
      %588 = vmatprep.subr.mxu0 0.0
      %589 = vmatpush1.msra.mxu0 0.0
      %590 = vmatprep.subr.mxu0 0.0
      %591 = vmatpush1.msra.mxu0 0.0
      %592 = vmatprep.subr.mxu0 0.0
      %593 = vmatpush1.msra.mxu0 0.0
      %594 = vmatprep.subr.mxu0 0.0
      %595 = vmatpush1.msra.mxu0 0.0
      %596 = vmatprep.subr.mxu0 0.0
      %597 = vmatpush1.msra.mxu0 0.0
      %598 = vmatprep.subr.mxu0 0.0
      %599 = vmatpush1.msra.mxu0 0.0
      %600 = vmatprep.subr.mxu0 0.0
      %601 = vmatpush1.msra.mxu0 0.0
      %602 = vmatprep.subr.mxu0 0.0
      %603 = vmatpush1.msra.mxu0 0.0
      %604 = vmatprep.subr.mxu0 0.0
      %605 = vmatpush1.msra.mxu0 0.0
      %606 = vmatprep.subr.mxu0 0.0
      %607 = vmatpush1.msra.mxu0 0.0
      %608 = vmatprep.subr.mxu0 0.0
      %609 = vmatpush1.msra.mxu0 0.0
      %610 = vmatprep.subr.mxu0 0.0
      %611 = vmatpush1.msra.mxu0 0.0
      %612 = vmatprep.subr.mxu0 0.0
      %613 = vmatpush1.msra.mxu0 0.0
      %614 = vmatprep.subr.mxu0 0.0
      %615 = vmatpush1.msra.mxu0 0.0
      %616 = vmatprep.subr.mxu0 0.0
      %617 = vmatpush1.msra.mxu0 0.0
      %618 = vmatprep.subr.mxu0 0.0
      %619 = vmatpush1.msra.mxu0 0.0
      %620 = vmatprep.mubr.f32.mxu0 0.0
      %621 = vmatmul.mubr.f32.gmra.mrb[0].mxu0 %v554
      %v622 = vpop.f32.mrb[0].mxu0
      %v623 = vadd.f32 0.0, %v622
      %v624 = vpop.f32.mrb[0].mxu0
      %v625 = vadd.f32 0.0, %v624
      %626 = vdwg.mxu0
      %627 = vmatprep.subr.mxu0 %v535
      %628 = vmatpush1.msra.mxu0 %v534
      %629 = vmatprep.subr.mxu0 %v539
      %630 = vmatpush1.msra.mxu0 %v538
      %631 = vmatprep.subr.mxu0 %v543
      %632 = vmatpush1.msra.mxu0 %v542
      %633 = vmatprep.subr.mxu0 %v547
      %634 = vmatpush1.msra.mxu0 %v546
      %635 = vmatprep.subr.mxu0 %v551
      %636 = vmatpush1.msra.mxu0 %v550
      %637 = vmatprep.subr.mxu0 0.0
      %638 = vmatpush1.msra.mxu0 0.0
      %639 = vmatprep.subr.mxu0 0.0
      %640 = vmatpush1.msra.mxu0 0.0
      %641 = vmatprep.subr.mxu0 0.0
      %642 = vmatpush1.msra.mxu0 0.0
      %643 = vmatprep.subr.mxu0 0.0
      %644 = vmatpush1.msra.mxu0 0.0
      %645 = vmatprep.subr.mxu0 0.0
      %646 = vmatpush1.msra.mxu0 0.0
      %647 = vmatprep.subr.mxu0 0.0
      %648 = vmatpush1.msra.mxu0 0.0
      %649 = vmatprep.subr.mxu0 0.0
      %650 = vmatpush1.msra.mxu0 0.0
      %651 = vmatprep.subr.mxu0 0.0
      %652 = vmatpush1.msra.mxu0 0.0
      %653 = vmatprep.subr.mxu0 0.0
      %654 = vmatpush1.msra.mxu0 0.0
      %655 = vmatprep.subr.mxu0 0.0
      %656 = vmatpush1.msra.mxu0 0.0
      %657 = vmatprep.subr.mxu0 0.0
      %658 = vmatpush1.msra.mxu0 0.0
      %659 = vmatprep.subr.mxu0 0.0
      %660 = vmatpush1.msra.mxu0 0.0
      %661 = vmatprep.subr.mxu0 0.0
      %662 = vmatpush1.msra.mxu0 0.0
      %663 = vmatprep.subr.mxu0 0.0
      %664 = vmatpush1.msra.mxu0 0.0
      %665 = vmatprep.subr.mxu0 0.0
      %666 = vmatpush1.msra.mxu0 0.0
      %667 = vmatprep.subr.mxu0 0.0
      %668 = vmatpush1.msra.mxu0 0.0
      %669 = vmatprep.subr.mxu0 0.0
      %670 = vmatpush1.msra.mxu0 0.0
      %671 = vmatprep.subr.mxu0 0.0
      %672 = vmatpush1.msra.mxu0 0.0
      %673 = vmatprep.subr.mxu0 0.0
      %674 = vmatpush1.msra.mxu0 0.0
      %675 = vmatprep.subr.mxu0 0.0
      %676 = vmatpush1.msra.mxu0 0.0
      %677 = vmatprep.subr.mxu0 0.0
      %678 = vmatpush1.msra.mxu0 0.0
      %679 = vmatprep.subr.mxu0 0.0
      %680 = vmatpush1.msra.mxu0 0.0
      %681 = vmatprep.subr.mxu0 0.0
      %682 = vmatpush1.msra.mxu0 0.0
      %683 = vmatprep.subr.mxu0 0.0
      %684 = vmatpush1.msra.mxu0 0.0
      %685 = vmatprep.subr.mxu0 0.0
      %686 = vmatpush1.msra.mxu0 0.0
      %687 = vmatprep.subr.mxu0 0.0
      %688 = vmatpush1.msra.mxu0 0.0
      %689 = vmatprep.subr.mxu0 0.0
      %690 = vmatpush1.msra.mxu0 0.0
      %691 = vmatprep.mubr.f32.mxu0 0.0
      %692 = vmatmul.mubr.f32.gmra.mrb[0].mxu0 %v554
      %v693 = vpop.f32.mrb[0].mxu0
      %v694 = vadd.f32 0.0, %v693
      %v695 = vpop.f32.mrb[0].mxu0
      %v696 = vadd.f32 0.0, %v695
      %697 = vdwg.mxu0
      %v698 = vmax.f32 %v623, %v625
      %v699 = vmax.f32 %v694, %v696
      %v700 = vmax.f32 %v698, %v699
      %v701 = vld [vmem:[%s2] sm:$0xff]
      %703 = vset.pattern.permute.xlu0 0
      %704 = vperm.xlu0 %703, %v701
      %v705 = vpop.permute.xlu0 %704
      %v707 = vadd.f32 %v700, %v705
      %v708 = vmax.f32 %v707, 0.0
      %709 = vst [vmem:[%s168] sm:$0xff] %v708
      %p710 = scmp.lt.s32.totalorder %s14, 1
      %s711 = scalar_select %p710, %s14, 1
      %s712 = smul.addr %s711, 8
      %s713 = scalar_lea.vmem %s3, %s712
      // Predicated region
      $region33: #{conv_block_forward.1} parent=31 // pred_check
        %p714 = pneg %p100
      $region34: #{conv_block_forward.1} parent=31 // pred_check_branch
        %716 = sbr.rel (%p714) target = $region36
      $region35: #{conv_block_forward.1} parent=31 // pred_region
        _
      $region36: #{conv_block_forward.1} parent=31 // pred_fallthru
        _
    $region32: #{conv_block_forward.1} parent=5 // pred_fallthru
      _
    %p717 = scmp.le.s32.totalorder 2, %s9
    // Predicated region
    $region37: #{conv_block_forward.1} parent=5 // pred_check
      %p718 = pneg %p717
    $region38: #{conv_block_forward.1} parent=5 // pred_check_branch
      %720 = sbr.rel (%p718) target = $region40
    $region39: #{conv_block_forward.1} parent=5 // pred_region
      %s721 = ssub.s32 %s9, 2
      // Predicated region
      $region41: #{conv_block_forward.1} parent=39 // pred_check
        %p722 = pneg %p106
      $region42: #{conv_block_forward.1} parent=39 // pred_check_branch
        %724 = sbr.rel (%p722) target = $region44
      $region43: #{conv_block_forward.1} parent=39 // pred_region
        %p725 = scmp.lt.s32.totalorder %s15, 1
        %s726 = scalar_select %p725, %s15, 1
        %s727 = smul.addr %s726, 8
        %s728 = scalar_lea.vmem %s3, %s727
      $region44: #{conv_block_forward.1} parent=39 // pred_fallthru
        _
    $region40: #{conv_block_forward.1} parent=5 // pred_fallthru
      _
  $region6: #{conv_block_forward.1} parent=0 // loop_footer
    %s13 = sadd.s32 1, %s9
  $region7: #{conv_block_forward.1} parent=0 // loop_footer_branch
    %8 = sbr.rel target = $region3
  $region8: #{conv_block_forward.1} parent=0 // loop_exit
    _

</llo_original>
